<compile_context>
chip_gen: v5e
topology: v5e:2x2
jax: 0.10.0
libtpu: 0.0.40
codegen_flags: <defaults>
</compile_context>

<pallas_src>
import jax
import jax.numpy as jnp
from jax.experimental import pallas as pl
from jax.experimental.pallas import tpu as pltpu


def _unary_op(v):
    # The "operator" of ModelConstEvalPass, instantiated as ReLU (no kwargs).
    return jnp.maximum(v, 0.0)


def _const_eval_kernel(x_ref, c_ref, o_ref):
    # c_ref already holds op(c) (const-evaluated once at module-init time),
    # so each forward call only does op(x) + c. Pure VPU elementwise.
    o_ref[...] = _unary_op(x_ref[...]) + c_ref[...]


def _pick_lanes(total):
    # Widest lane-dense last dim (multiple of 128) that divides the element
    # count -> unmasked dense vld/vst streams and fewer grid steps.
    for lanes in (2048, 1024, 512, 256, 128):
        if total % lanes == 0:
            return lanes
    return None


# Per-operand block budget (~4 MiB): 3 operands x 2 pipeline buffers ~= 24 MiB,
# within the 48 MiB scoped-VMEM limit we request below and well under v7x's
# 64 MiB physical VMEM per TensorCore.
_BLOCK_BYTES = 4 * 1024 * 1024
# Below this per-operand size, plain XLA fusion beats pallas_call launch +
# per-step overhead.
_BYPASS_BYTES = 1 << 20


def const_eval_pass(x, c_evaled, *, donate_x=False, force_pallas=False):
    """out = op(x) + c_evaled, with c_evaled = op(c) precomputed once."""
    assert x.shape == c_evaled.shape, "x and constant must share the module shape"
    orig_shape = x.shape
    total = x.size
    itemsize = x.dtype.itemsize

    def _plain():
        return _unary_op(x) + c_evaled

    # Small-tensor bypass: launch/per-step overhead dominates below ~1 MiB.
    if total * itemsize < _BYPASS_BYTES and not force_pallas:
        return _plain()

    lanes = _pick_lanes(total)
    if lanes is None:
        # Element count not a multiple of 128: fall back to plain XLA rather
        # than introducing a padding copy for a memory-bound elementwise op.
        return _plain()
    rows = total // lanes

    # Dtype-aware sublane alignment: 8 rows for 4-byte, 16 for 2-byte,
    # 32 for 1-byte dtypes (sub-32-bit dtypes pack along sublanes).
    align = 8 * max(1, 4 // itemsize)

    bytes_per_row = lanes * itemsize
    cap_rows = max(align, _BLOCK_BYTES // bytes_per_row)

    if rows <= cap_rows:
        if rows >= 2 * align:
            # Split into (at least) two dense, aligned blocks so both v7x
            # TensorCores get work; neutral on single-TC v5e/v6e.
            half = pl.cdiv(rows, 2)
            row_tile = ((half + align - 1) // align) * align
        else:
            row_tile = rows  # single full-extent block: (8,128) rule waived
    else:
        row_tile = (cap_rows // align) * align  # aligned tiled blocks
    num_blocks = pl.cdiv(rows, row_tile)        # ragged tail masked by Pallas

    x2 = x.reshape(rows, lanes)
    c2 = c_evaled.reshape(rows, lanes)

    spec = pl.BlockSpec((row_tile, lanes), lambda i: (i, 0))

    kwargs = {}
    if donate_x:
        # Caller promises x is donatable: reuse its HBM buffer for the output.
        kwargs["input_output_aliases"] = {0: 0}

    out2 = pl.pallas_call(
        _const_eval_kernel,
        out_shape=jax.ShapeDtypeStruct((rows, lanes), x.dtype),
        grid=(num_blocks,),
        in_specs=[spec, spec],
        out_specs=spec,
        compiler_params=pltpu.CompilerParams(
            # Row blocks are independent -> shard across both TCs on v7x;
            # neutral on single-TC v5e/v6e.
            dimension_semantics=("parallel",),
            # Raise scoped VMEM so 4 MiB blocks fit on v5e's 16 MiB default;
            # 48 MiB stays under v7x's 64 MiB physical VMEM.
            vmem_limit_bytes=48 << 20,
        ),
        cost_estimate=pl.CostEstimate(
            flops=2 * total,  # ~1 add + 1 compare/select per element (advisory)
            transcendentals=0,
            bytes_accessed=3 * total * itemsize,  # read x, c; write out
        ),
        **kwargs,
    )(x2, c2)

    return out2.reshape(orig_shape)


if __name__ == "__main__":
    key = jax.random.PRNGKey(0)

    # Small shapes consistent with the module (single 4-D tensor shape).
    # (2,4,16,16) is the canonical small case; the others exercise the
    # multi-block / ragged-tail Pallas paths at still-small sizes.
    shapes = [
        (2, 4, 16, 16),    # tiny: default path uses the bypass
        (2, 8, 64, 128),   # splits into 2 dense row blocks when forced
        (2, 8, 72, 128),   # ragged tail across row blocks when forced
    ]

    ok = True
    for shape in shapes:
        key, kx, kc = jax.random.split(key, 3)
        # Input x.
        x = jax.random.normal(kx, shape, dtype=jnp.float32)
        # Deterministic constant c, mirroring torch.rand(shape) - 0.5.
        c = jax.random.uniform(kc, shape, dtype=jnp.float32) - 0.5
        # Const-eval pass: op(c) computed once at "module construction" time.
        c_evaled = _unary_op(c)

        ref = jnp.maximum(x, 0.0) + jnp.maximum(c, 0.0)

        # Default path (may use the small-tensor bypass).
        out = jax.block_until_ready(const_eval_pass(x, c_evaled))
        ok &= bool(out.shape == shape) and bool(jnp.allclose(out, ref, atol=1e-6))

        # Force the Pallas kernel path to exercise it at these small shapes.
        out_k = jax.block_until_ready(
            const_eval_pass(x, c_evaled, force_pallas=True))
        ok &= bool(out_k.shape == shape) and bool(jnp.allclose(out_k, ref, atol=1e-6))

    assert ok, "mismatch vs reference"
    print("KERNEL_OK")
</pallas_src>

<mosaic_0001>
module attributes {stable_mosaic.version = 11 : i64} {
  func.func @_const_eval_kernel(%arg0: i32, %arg1: memref<1x2048xf32, #tpu.memory_space<vmem>>, %arg2: memref<1x2048xf32, #tpu.memory_space<vmem>>, %arg3: memref<1x2048xf32, #tpu.memory_space<vmem>>) attributes {dimension_semantics = [#tpu.dimension_semantics<parallel>], iteration_bounds = array<i64: 1>, scalar_prefetch = 0 : i64, scratch_operands = 0 : i64, tpu.core_type = #tpu.core_type<tc>, window_params = [{transform_indices = @transform_0, window_bounds = array<i64: 1, 2048>}, {transform_indices = @transform_1, window_bounds = array<i64: 1, 2048>}, {transform_indices = @transform_2, window_bounds = array<i64: 1, 2048>}]} {
    %c0 = arith.constant 0 : index
    %c0_0 = arith.constant 0 : index
    %0 = vector.load %arg1[%c0, %c0_0] : memref<1x2048xf32, #tpu.memory_space<vmem>>, vector<1x2048xf32>
    %cst = arith.constant 0.000000e+00 : f32
    %1 = vector.broadcast %cst : f32 to vector<1x2048xf32>
    %2 = arith.maximumf %0, %1 : vector<1x2048xf32>
    %c0_1 = arith.constant 0 : index
    %c0_2 = arith.constant 0 : index
    %3 = vector.load %arg2[%c0_1, %c0_2] : memref<1x2048xf32, #tpu.memory_space<vmem>>, vector<1x2048xf32>
    %4 = arith.addf %2, %3 : vector<1x2048xf32>
    %c0_3 = arith.constant 0 : index
    %c0_4 = arith.constant 0 : index
    %5 = vector.load %arg3[%c0_3, %c0_4] : memref<1x2048xf32, #tpu.memory_space<vmem>>, vector<1x2048xf32>
    tpu.vector_store %arg3[%c0_3, %c0_4], %4 {strides = array<i32>} : memref<1x2048xf32, #tpu.memory_space<vmem>>, vector<1x2048xf32>,
    return
  }
  func.func @transform_0(%arg0: i32) -> (i32, i32) {
    %c0_i32 = arith.constant 0 : i32
    %c0_i32_0 = arith.constant 0 : i32
    return %arg0, %c0_i32 : i32, i32
  }
  func.func @transform_1(%arg0: i32) -> (i32, i32) {
    %c0_i32 = arith.constant 0 : i32
    %c0_i32_0 = arith.constant 0 : i32
    return %arg0, %c0_i32 : i32, i32
  }
  func.func @transform_2(%arg0: i32) -> (i32, i32) {
    %c0_i32 = arith.constant 0 : i32
    %c0_i32_0 = arith.constant 0 : i32
    return %arg0, %c0_i32 : i32, i32
  }
}

</mosaic_0001>

<llo_original>
// kernel: tpu_custom_call.1
$region0: #{tpu_custom_call.1}
  #allocation0 [shape = 'u32[]', space=smem, size = 0x4, offset = 0x4, fixed_abs, tag = 'smem constant byte address 0x4 - core index']
  #allocation1 [shape = 'u32[72,128]{1,0:T(1,128)}', space=vmem, size = 0x9000, scoped, tag = 'internal scratch']
  %s0 = inlined_call_operand.hbm [shape: f32[1,2048], index: 0, kind: input, shape index: {}]
  %s1 = inlined_call_operand.hbm [shape: f32[1,2048], index: 1, kind: input, shape index: {}]
  %s2 = inlined_call_operand.hbm [shape: f32[1,2048], index: 2, kind: output, shape index: {}]
  %s3 = sld [smem:[#allocation0]]
  $region26: #{tpu_custom_call.1} parent=0
    _
  %s5 = ssub.s32 1, %s3
  %s6 = scalar_select 0, %s5, %s3
  $region1: #{tpu_custom_call.1} parent=0
    #allocation2 [shape = 'u8[8192]{0}', space=vmem, size = 0x2000, scoped, tag = 'input window, operand 0, single buffered']
    #allocation3 [shape = 's32[1]{0}', space=sflag, size = 0x4, scoped, tag = 'scoped memory for tpu_custom_call.1']
    #allocation4 [shape = 's32[1]{0}', space=sflag, size = 0x4, scoped, tag = 'scoped memory for tpu_custom_call.1']
    #allocation5 [shape = 'u8[8192]{0}', space=vmem, size = 0x2000, scoped, tag = 'input window, operand 1, single buffered']
    #allocation6 [shape = 's32[1]{0}', space=sflag, size = 0x4, scoped, tag = 'scoped memory for tpu_custom_call.1']
    #allocation7 [shape = 'u8[8192]{0}', space=vmem, size = 0x2000, scoped, tag = 'output window, operand 0, single buffered']
    %7 = vsyncpa [#allocation3], 0
    %8 = vsyncpa [#allocation6], 0
    %9 = vsyncpa [#allocation4], 0
    // Predicated region
    $region2: #{tpu_custom_call.1} parent=1 // pred_check
      _
    $region3: #{tpu_custom_call.1} parent=1 // pred_check_branch
      %11 = sbr.rel (0) target = $region5
    $region4: #{tpu_custom_call.1} parent=1 // pred_region
      %13 = vsyncadd [#allocation3], 0
      %s15 = sshll.u32 %s0, 4
      %s16 = int_to_ptr.hbm [resolvable:$true] %s15
      %s17 = sshll.u32 [#allocation2], 4
      %s18 = int_to_ptr.vmem [resolvable:$true] %s17
      %20 = dma.hbm_to_vmem [thread:$0]  %s16, 256, %s18, [#allocation3]
    $region5: #{tpu_custom_call.1} parent=1 // pred_fallthru
      _
    // Predicated region
    $region6: #{tpu_custom_call.1} parent=1 // pred_check
      _
    $region7: #{tpu_custom_call.1} parent=1 // pred_check_branch
      %22 = sbr.rel (0) target = $region9
    $region8: #{tpu_custom_call.1} parent=1 // pred_region
      %24 = vsyncadd [#allocation6], 0
      %s26 = sshll.u32 %s1, 4
      %s27 = int_to_ptr.hbm [resolvable:$true] %s26
      %s28 = sshll.u32 [#allocation5], 4
      %s29 = int_to_ptr.vmem [resolvable:$true] %s28
      %31 = dma.hbm_to_vmem [thread:$0]  %s27, 256, %s29, [#allocation6]
    $region9: #{tpu_custom_call.1} parent=1 // pred_fallthru
      _
    // Predicated region
    $region10: #{tpu_custom_call.1} parent=1 // pred_check
      _
    $region11: #{tpu_custom_call.1} parent=1 // pred_check_branch
      %33 = sbr.rel (0) target = $region13
    $region12: #{tpu_custom_call.1} parent=1 // pred_region
      %35 = dma.done [#allocation3], 256
    $region13: #{tpu_custom_call.1} parent=1 // pred_fallthru
      _
    // Predicated region
    $region14: #{tpu_custom_call.1} parent=1 // pred_check
      _
    $region15: #{tpu_custom_call.1} parent=1 // pred_check_branch
      %37 = sbr.rel (0) target = $region17
    $region16: #{tpu_custom_call.1} parent=1 // pred_region
      %39 = dma.done [#allocation6], 256
    $region17: #{tpu_custom_call.1} parent=1 // pred_fallthru
      _
    %v40 = vld [vmem:[#allocation2] sm:$0xff]
    %v41 = vld [vmem:[#allocation2 + $0x8] sm:$0xff]
    %v42 = vmax.f32 %v40, 0.0
    %v43 = vmax.f32 %v41, 0.0
    %v44 = vld [vmem:[#allocation5] sm:$0xff]
    %v45 = vld [vmem:[#allocation5 + $0x8] sm:$0xff]
    %v46 = vadd.f32 %v42, %v44
    %v47 = vadd.f32 %v43, %v45
    %48 = vst [vmem:[#allocation7] sm:$0xff] %v46
    %49 = vst [vmem:[#allocation7 + $0x8] sm:$0xff] %v47
    // Predicated region
    $region18: #{tpu_custom_call.1} parent=1 // pred_check
      _
    $region19: #{tpu_custom_call.1} parent=1 // pred_check_branch
      %51 = sbr.rel (0) target = $region21
    $region20: #{tpu_custom_call.1} parent=1 // pred_region
      %53 = vsyncadd [#allocation4], 0
      %s55 = sshll.u32 [#allocation7], 4
      %s56 = int_to_ptr.vmem [resolvable:$true] %s55
      %s57 = sshll.u32 %s2, 4
      %s58 = int_to_ptr.hbm [resolvable:$true] %s57
      %60 = dma.vmem_to_hbm [thread:$0]  %s56, 256, %s58, [#allocation4]
    $region21: #{tpu_custom_call.1} parent=1 // pred_fallthru
      _
    // Predicated region
    $region22: #{tpu_custom_call.1} parent=1 // pred_check
      _
    $region23: #{tpu_custom_call.1} parent=1 // pred_check_branch
      %62 = sbr.rel (0) target = $region25
    $region24: #{tpu_custom_call.1} parent=1 // pred_region
      %64 = dma.done [#allocation4], 256
    $region25: #{tpu_custom_call.1} parent=1 // pred_fallthru
      _
    %65 = vsyncpa [#allocation3], 1
    %66 = vsyncpa [#allocation6], 1
    %67 = vsyncpa [#allocation4], 1

</llo_original>
